<compile_context>
chip_gen: v7x
topology: tpu7x:2x2x1
jax: 0.10.0
libtpu: 0.0.40
codegen_flags: <defaults>
</compile_context>

<pallas_src>
import jax
import jax.numpy as jnp
from jax.experimental import pallas as pl
from jax.experimental.pallas import tpu as pltpu

OUT_FEATURES = 500
MAX_BATCH_TILE = 512  # batch rows per grid step when B is large


def linear_kernel(x_ref, w_ref, b_ref, o_ref):
    # bf16 x bf16 MXU matmul, f32 accumulate, f32 bias add (VPU), direct store.
    acc = jnp.dot(
        x_ref[...].astype(jnp.bfloat16),
        w_ref[...],
        preferred_element_type=jnp.float32,
    )
    o_ref[...] = (acc + b_ref[...]).astype(o_ref.dtype)


def prepare_params(weight, bias):
    """One-time parameter prep (hoisted out of the per-call path).

    weight: (500, F) f32  (PyTorch nn.Linear layout)
    bias:   (500,)   f32
    Returns (F, 500) bf16 transposed weight and (1, 500) f32 bias row.
    """
    w_t = weight.T.astype(jnp.bfloat16)          # halves the dominant weight DMA
    b_row = bias.reshape(1, -1).astype(jnp.float32)
    return w_t, b_row


@jax.jit
def neural_classifier_sample_forward(data, w_t, b_row):
    """data: (B, F) f32; w_t: (F, 500) bf16; b_row: (1, 500) f32 -> (B, 500) f32."""
    B, F = data.shape
    N = w_t.shape[1]  # 500

    # Tile the batch so large B still fits VMEM (v7x: 64 MiB) and pipelines;
    # for small B this is a single full-array block (grid=(1,)).
    tm = B if B <= MAX_BATCH_TILE else MAX_BATCH_TILE
    grid = (pl.cdiv(B, tm),)

    cost = pl.CostEstimate(
        flops=2 * B * F * N,
        transcendentals=0,
        bytes_accessed=4 * B * F + 2 * F * N + 4 * N + 4 * B * N,
    )

    return pl.pallas_call(
        linear_kernel,
        out_shape=jax.ShapeDtypeStruct((B, N), jnp.float32),
        grid_spec=pl.GridSpec(
            grid=grid,
            in_specs=[
                # data: tiled over batch; F equals full array dim.
                pl.BlockSpec((tm, F), lambda i: (i, 0)),
                # weight / bias: same block every step -> stays resident.
                pl.BlockSpec((F, N), lambda i: (0, 0)),
                pl.BlockSpec((1, N), lambda i: (0, 0)),
            ],
            # N=500 equals the full array dim -> bypasses the 128-lane rule;
            # writing (B, 500) directly removes the post-kernel slice op.
            out_specs=pl.BlockSpec((tm, N), lambda i: (i, 0)),
        ),
        compiler_params=pltpu.CompilerParams(
            dimension_semantics=("parallel",),
        ),
        cost_estimate=cost,
    )(data, w_t, b_row)


if __name__ == "__main__":
    # Small shapes consistent with the module: batch=8, feature_size=32, out=500.
    batch = 8
    feature_size = 32

    key = jax.random.PRNGKey(0)
    k_data, k_w, k_b = jax.random.split(key, 3)

    data = jax.random.normal(k_data, (batch, feature_size), dtype=jnp.float32)

    # Deterministic parameter init mimicking PyTorch nn.Linear default:
    # U(-1/sqrt(fan_in), 1/sqrt(fan_in))
    bound = 1.0 / jnp.sqrt(jnp.float32(feature_size))
    weight = jax.random.uniform(
        k_w, (OUT_FEATURES, feature_size), dtype=jnp.float32,
        minval=-bound, maxval=bound)
    bias = jax.random.uniform(
        k_b, (OUT_FEATURES,), dtype=jnp.float32, minval=-bound, maxval=bound)

    # One-time parameter prep (hoisted out of the per-call path).
    w_t, b_row = prepare_params(weight, bias)
    w_t, b_row = jax.block_until_ready((w_t, b_row))

    out = neural_classifier_sample_forward(data, w_t, b_row)
    out = jax.block_until_ready(out)

    # Sanity check against plain-JAX f32 reference (bf16 weights/activations
    # in the kernel -> relaxed tolerance).
    ref = data @ weight.T + bias
    assert out.shape == (batch, OUT_FEATURES)
    assert jnp.allclose(out, ref, atol=2e-2, rtol=2e-2), (
        float(jnp.max(jnp.abs(out - ref))))

    print("KERNEL_OK")
</pallas_src>

<mosaic_0001>
module attributes {stable_mosaic.version = 11 : i64} {
  func.func @linear_kernel(%arg0: i32, %arg1: memref<8x32xf32, #tpu.memory_space<vmem>>, %arg2: memref<32x500xbf16, #tpu.memory_space<vmem>>, %arg3: memref<1x500xf32, #tpu.memory_space<vmem>>, %arg4: memref<8x500xf32, #tpu.memory_space<vmem>>) attributes {dimension_semantics = [#tpu.dimension_semantics<parallel>], iteration_bounds = array<i64: 1>, scalar_prefetch = 0 : i64, scratch_operands = 0 : i64, tpu.core_type = #tpu.core_type<tc>, window_params = [{transform_indices = @transform_0, window_bounds = array<i64: 8, 32>}, {pipeline_mode = #tpu.pipeline_mode<synchronous>, transform_indices = @transform_1, window_bounds = array<i64: 32, 500>}, {pipeline_mode = #tpu.pipeline_mode<synchronous>, transform_indices = @transform_2, window_bounds = array<i64: 1, 500>}, {transform_indices = @transform_3, window_bounds = array<i64: 8, 500>}]} {
    %c0 = arith.constant 0 : index
    %c0_0 = arith.constant 0 : index
    %0 = vector.load %arg1[%c0, %c0_0] : memref<8x32xf32, #tpu.memory_space<vmem>>, vector<8x32xf32>
    %1 = arith.truncf %0 : vector<8x32xf32> to vector<8x32xbf16>
    %c0_1 = arith.constant 0 : index
    %c0_2 = arith.constant 0 : index
    %2 = vector.load %arg2[%c0_1, %c0_2] : memref<32x500xbf16, #tpu.memory_space<vmem>>, vector<32x500xbf16>
    %cst = arith.constant dense<0.000000e+00> : vector<8x500xf32>
    %3 = tpu.matmul %1, %2, %cst {dimension_numbers = #tpu.dot_dimension_numbers<[1], [0], [0], [1], [0, 0, 1, 1], [], []>} : vector<8x32xbf16>, vector<32x500xbf16>, vector<8x500xf32> -> vector<8x500xf32>
    %c0_3 = arith.constant 0 : index
    %c0_4 = arith.constant 0 : index
    %4 = vector.load %arg3[%c0_3, %c0_4] : memref<1x500xf32, #tpu.memory_space<vmem>>, vector<1x500xf32>
    %5 = vector.broadcast %4 : vector<1x500xf32> to vector<8x500xf32>
    %6 = arith.addf %3, %5 : vector<8x500xf32>
    %c0_5 = arith.constant 0 : index
    %c0_6 = arith.constant 0 : index
    %7 = vector.load %arg4[%c0_5, %c0_6] : memref<8x500xf32, #tpu.memory_space<vmem>>, vector<8x500xf32>
    tpu.vector_store %arg4[%c0_5, %c0_6], %6 {strides = array<i32>} : memref<8x500xf32, #tpu.memory_space<vmem>>, vector<8x500xf32>,
    return
  }
  func.func @transform_0(%arg0: i32) -> (i32, i32) {
    %c0_i32 = arith.constant 0 : i32
    %c0_i32_0 = arith.constant 0 : i32
    return %arg0, %c0_i32 : i32, i32
  }
  func.func @transform_1(%arg0: i32) -> (i32, i32) {
    %c0_i32 = arith.constant 0 : i32
    %c0_i32_0 = arith.constant 0 : i32
    %c0_i32_1 = arith.constant 0 : i32
    return %c0_i32, %c0_i32_0 : i32, i32
  }
  func.func @transform_2(%arg0: i32) -> (i32, i32) {
    %c0_i32 = arith.constant 0 : i32
    %c0_i32_0 = arith.constant 0 : i32
    %c0_i32_1 = arith.constant 0 : i32
    return %c0_i32, %c0_i32_0 : i32, i32
  }
  func.func @transform_3(%arg0: i32) -> (i32, i32) {
    %c0_i32 = arith.constant 0 : i32
    %c0_i32_0 = arith.constant 0 : i32
    return %arg0, %c0_i32 : i32, i32
  }
}

</mosaic_0001>

<llo_original>
// kernel: neural_classifier_sample_forward.1
$region0: #{neural_classifier_sample_forward.1}
  #allocation0 [shape = 'u32[]', space=smem, size = 0x4, offset = 0x4, fixed_abs, tag = 'smem constant byte address 0x4 - core index']
  #allocation1 [shape = 'u32[144,128]{1,0:T(1,128)}', space=vmem, size = 0x12000, scoped, tag = 'internal scratch']
  %s0 = inlined_call_operand.hbm [shape: f32[8,32], index: 0, kind: input, shape index: {}]
  %s1 = inlined_call_operand.hbm [shape: bf16[32,500], index: 1, kind: input, shape index: {}]
  %s2 = inlined_call_operand.vmem [shape: f32[1,500], index: 2, kind: input, shape index: {}]
  %s3 = inlined_call_operand.hbm [shape: f32[8,500], index: 3, kind: output, shape index: {}]
  %s4 = sld [smem:[#allocation0]]
  $region30: #{neural_classifier_sample_forward.1} parent=0
    _
  %s6 = ssub.s32 1, %s4
  %s7 = scalar_select 0, %s6, %s4
  $region1: #{neural_classifier_sample_forward.1} parent=0
    #allocation2 [shape = 'u8[4096]{0}', space=vmem, size = 0x1000, scoped, tag = 'input window, operand 0, single buffered']
    #allocation3 [shape = 's32[1]{0}', space=sflag, size = 0x4, scoped, tag = 'scoped memory for neural_classifier_sample_forward.1']
    #allocation4 [shape = 's32[1]{0}', space=sflag, size = 0x4, scoped, tag = 'scoped memory for neural_classifier_sample_forward.1']
    #allocation5 [shape = 'u8[32768]{0}', space=vmem, size = 0x8000, scoped, tag = 'input window, operand 1, single buffered']
    #allocation6 [shape = 's32[1]{0}', space=sflag, size = 0x4, scoped, tag = 'scoped memory for neural_classifier_sample_forward.1']
    #allocation7 [shape = 'u8[16384]{0}', space=vmem, size = 0x4000, scoped, tag = 'output window, operand 0, single buffered']
    %8 = vsyncpa [#allocation3], 0
    %9 = vsyncpa [#allocation6], 0
    %10 = vsyncpa [#allocation4], 0
    // Predicated region
    $region2: #{neural_classifier_sample_forward.1} parent=1 // pred_check
      _
    $region3: #{neural_classifier_sample_forward.1} parent=1 // pred_check_branch
      %12 = sbr.rel (0) target = $region5
    $region4: #{neural_classifier_sample_forward.1} parent=1 // pred_region
      %s14 = ssub.s32 128, 128
      %15 = vsyncadd [#allocation3], %s14
      %s17 = sshll.u32 [#allocation2], 4
      %s18 = int_to_ptr.vmem [resolvable:$true] %s17
      %20 = dma.hbm_to_vmem [thread:$0]  %s0, 128, %s18, [#allocation3]
    $region5: #{neural_classifier_sample_forward.1} parent=1 // pred_fallthru
      _
    // Predicated region
    $region6: #{neural_classifier_sample_forward.1} parent=1 // pred_check
      _
    $region7: #{neural_classifier_sample_forward.1} parent=1 // pred_check_branch
      %22 = sbr.rel (0) target = $region9
    $region8: #{neural_classifier_sample_forward.1} parent=1 // pred_region
      %s24 = ssub.s32 1024, 1024
      %25 = vsyncadd [#allocation6], %s24
      %s26 = sshll.u32 [#allocation5], 4
      %s27 = int_to_ptr.vmem [resolvable:$true] %s26
      %32 = dma.hbm_to_vmem [thread:$0]  %s1, 1024, %s27, [#allocation6], 256, 256, 16
    $region9: #{neural_classifier_sample_forward.1} parent=1 // pred_fallthru
      _
    // Predicated region
    $region10: #{neural_classifier_sample_forward.1} parent=1 // pred_check
      _
    $region11: #{neural_classifier_sample_forward.1} parent=1 // pred_check_branch
      %34 = sbr.rel (0) target = $region13
    $region12: #{neural_classifier_sample_forward.1} parent=1 // pred_region
      _
    $region13: #{neural_classifier_sample_forward.1} parent=1 // pred_fallthru
      _
    // Predicated region
    $region14: #{neural_classifier_sample_forward.1} parent=1 // pred_check
      _
    $region15: #{neural_classifier_sample_forward.1} parent=1 // pred_check_branch
      %36 = sbr.rel (0) target = $region17
    $region16: #{neural_classifier_sample_forward.1} parent=1 // pred_region
      %37 = dma.done [#allocation3], 128
    $region17: #{neural_classifier_sample_forward.1} parent=1 // pred_fallthru
      _
    // Predicated region
    $region18: #{neural_classifier_sample_forward.1} parent=1 // pred_check
      _
    $region19: #{neural_classifier_sample_forward.1} parent=1 // pred_check_branch
      %39 = sbr.rel (0) target = $region21
    $region20: #{neural_classifier_sample_forward.1} parent=1 // pred_region
      %40 = dma.done [#allocation6], 1024
    $region21: #{neural_classifier_sample_forward.1} parent=1 // pred_fallthru
      _
    %v42 = vld [vmem:[#allocation2] sm:$0xff]
    %v43 = vpack.c.bf16 %v42, %v42
    %v44 = vld [vmem:[#allocation5] sm:$0xff]
    %v45 = vld [vmem:[#allocation5 + $0x8] sm:$0xff]
    %v46 = vld [vmem:[#allocation5 + $0x10] sm:$0xff]
    %v47 = vld [vmem:[#allocation5 + $0x18] sm:$0xff]
    %v48 = vld [vmem:[#allocation5 + $0x20] sm:$0xff]
    %v49 = vld [vmem:[#allocation5 + $0x28] sm:$0xff]
    %v50 = vld [vmem:[#allocation5 + $0x30] sm:$0xff]
    %v51 = vld [vmem:[#allocation5 + $0x38] sm:$0xff]
    %v52 = vld [vmem:[%s2] sm:$0xf]
    %v54 = vlaneseq
    %v55 = vshrl.u32 %v54, 7
    %v56 = vsub.s32 0, %v55
    %v57 = vrot.slane %v52, %v56
    %v58 = vlaneseq
    %v59 = vshrl.u32 %v58, 7
    %v60 = vsub.s32 1, %v59
    %v61 = vrot.slane %v52, %v60
    %v62 = vlaneseq
    %v63 = vshrl.u32 %v62, 7
    %v64 = vsub.s32 2, %v63
    %v65 = vrot.slane %v52, %v64
    %v66 = vlaneseq
    %v67 = vshrl.u32 %v66, 7
    %v68 = vsub.s32 3, %v67
    %v69 = vrot.slane %v52, %v68
    %v82 = vunpack.c.l.b16 %v44
    %v83 = vunpack.c.h.b16 %v44
    %v84 = vunpack.c.l.b16 %v45
    %v85 = vunpack.c.h.b16 %v45
    %v86 = vunpack.c.l.b16 %v46
    %v87 = vunpack.c.h.b16 %v46
    %v88 = vunpack.c.l.b16 %v47
    %v89 = vunpack.c.h.b16 %v47
    %v90 = vunpack.c.l.b16 %v48
    %v91 = vunpack.c.h.b16 %v48
    %v92 = vunpack.c.l.b16 %v49
    %v93 = vunpack.c.h.b16 %v49
    %v94 = vunpack.c.l.b16 %v50
    %v95 = vunpack.c.h.b16 %v50
    %v96 = vunpack.c.l.b16 %v51
    %v97 = vunpack.c.h.b16 %v51
    %v98 = vpack.c.b16 %v86, %v82
    %v99 = vpack.c.b16 %v87, %v83
    %v100 = vpack.c.b16 %v88, %v84
    %v101 = vpack.c.b16 %v89, %v85
    %v102 = vpack.c.b16 %v94, %v90
    %v103 = vpack.c.b16 %v95, %v91
    %v104 = vpack.c.b16 %v96, %v92
    %v105 = vpack.c.b16 %v97, %v93
    %vm114 = vcmask 261120
    %v116 = vsel %vm114, %v43, 0
    %118 = vmatprep.subr.bf16.mxu0 %v99
    %119 = vmatpush1.bf16.msra.mxu0 %v98
    %120 = vmatprep.subr.bf16.mxu0 %v103
    %121 = vmatpush1.bf16.msra.mxu0 %v102
    %122 = vmatprep.subr.bf16.mxu0 0
    %123 = vmatpush1.bf16.msra.mxu0 0
    %124 = vmatprep.subr.bf16.mxu0 0
    %125 = vmatpush1.bf16.msra.mxu0 0
    %126 = vmatprep.subr.bf16.mxu0 0
    %127 = vmatpush1.bf16.msra.mxu0 0
    %128 = vmatprep.subr.bf16.mxu0 0
    %129 = vmatpush1.bf16.msra.mxu0 0
    %130 = vmatprep.subr.bf16.mxu0 0
    %131 = vmatpush1.bf16.msra.mxu0 0
    %132 = vmatprep.subr.bf16.mxu0 0
    %133 = vmatpush1.bf16.msra.mxu0 0
    %134 = vmatprep.subr.bf16.mxu0 0
    %135 = vmatpush1.bf16.msra.mxu0 0
    %136 = vmatprep.subr.bf16.mxu0 0
    %137 = vmatpush1.bf16.msra.mxu0 0
    %138 = vmatprep.subr.bf16.mxu0 0
    %139 = vmatpush1.bf16.msra.mxu0 0
    %140 = vmatprep.subr.bf16.mxu0 0
    %141 = vmatpush1.bf16.msra.mxu0 0
    %142 = vmatprep.subr.bf16.mxu0 0
    %143 = vmatpush1.bf16.msra.mxu0 0
    %144 = vmatprep.subr.bf16.mxu0 0
    %145 = vmatpush1.bf16.msra.mxu0 0
    %146 = vmatprep.subr.bf16.mxu0 0
    %147 = vmatpush1.bf16.msra.mxu0 0
    %148 = vmatprep.subr.bf16.mxu0 0
    %149 = vmatpush1.bf16.msra.mxu0 0
    %150 = vmatprep.mubr.bf16.mxu0 0
    %151 = vmatmul.mubr.bf16.gmra.mrb[0].mxu0 %v116
    %v152 = vpop.f32.mrb[0].mxu0
    %v153 = vadd.f32 %v57, %v152
    %v154 = vpop.f32.mrb[0].mxu0
    %v155 = vadd.f32 %v61, %v154
    %v156 = vpop.f32.mrb[0].mxu0
    %v157 = vpop.f32.mrb[0].mxu0
    %158 = vdwg.mxu0
    %159 = vmatprep.subr.bf16.mxu0 %v101
    %160 = vmatpush1.bf16.msra.mxu0 %v100
    %161 = vmatprep.subr.bf16.mxu0 %v105
    %162 = vmatpush1.bf16.msra.mxu0 %v104
    %163 = vmatprep.subr.bf16.mxu0 0
    %164 = vmatpush1.bf16.msra.mxu0 0
    %165 = vmatprep.subr.bf16.mxu0 0
    %166 = vmatpush1.bf16.msra.mxu0 0
    %167 = vmatprep.subr.bf16.mxu0 0
    %168 = vmatpush1.bf16.msra.mxu0 0
    %169 = vmatprep.subr.bf16.mxu0 0
    %170 = vmatpush1.bf16.msra.mxu0 0
    %171 = vmatprep.subr.bf16.mxu0 0
    %172 = vmatpush1.bf16.msra.mxu0 0
    %173 = vmatprep.subr.bf16.mxu0 0
    %174 = vmatpush1.bf16.msra.mxu0 0
    %175 = vmatprep.subr.bf16.mxu0 0
    %176 = vmatpush1.bf16.msra.mxu0 0
    %177 = vmatprep.subr.bf16.mxu0 0
    %178 = vmatpush1.bf16.msra.mxu0 0
    %179 = vmatprep.subr.bf16.mxu0 0
    %180 = vmatpush1.bf16.msra.mxu0 0
    %181 = vmatprep.subr.bf16.mxu0 0
    %182 = vmatpush1.bf16.msra.mxu0 0
    %183 = vmatprep.subr.bf16.mxu0 0
    %184 = vmatpush1.bf16.msra.mxu0 0
    %185 = vmatprep.subr.bf16.mxu0 0
    %186 = vmatpush1.bf16.msra.mxu0 0
    %187 = vmatprep.subr.bf16.mxu0 0
    %188 = vmatpush1.bf16.msra.mxu0 0
    %189 = vmatprep.subr.bf16.mxu0 0
    %190 = vmatpush1.bf16.msra.mxu0 0
    %191 = vmatprep.mubr.bf16.mxu0 0
    %192 = vmatmul.mubr.bf16.gmra.mrb[0].mxu0 %v116
    %v193 = vpop.f32.mrb[0].mxu0
    %v194 = vadd.f32 %v65, %v193
    %v195 = vpop.f32.mrb[0].mxu0
    %v196 = vadd.f32 %v69, %v195
    %v197 = vpop.f32.mrb[0].mxu0
    %v198 = vpop.f32.mrb[0].mxu0
    %199 = vdwg.mxu0
    %200 = vst [vmem:[#allocation7] sm:$0xff] %v153
    %201 = vst [vmem:[#allocation7 + $0x8] sm:$0xff] %v155
    %202 = vst [vmem:[#allocation7 + $0x10] sm:$0xff] %v194
    %vm203 = vcmask 949248
    %204 = vst.msk [vmem:[#allocation7 + $0x18] sm:$0xff] %vm203, %v196
    // Predicated region
    $region22: #{neural_classifier_sample_forward.1} parent=1 // pred_check
      _
    $region23: #{neural_classifier_sample_forward.1} parent=1 // pred_check_branch
      %206 = sbr.rel (0) target = $region25
    $region24: #{neural_classifier_sample_forward.1} parent=1 // pred_region
      %s208 = ssub.s32 512, 512
      %209 = vsyncadd [#allocation4], %s208
      %s211 = sshll.u32 [#allocation7], 4
      %s212 = int_to_ptr.vmem [resolvable:$true] %s211
      %214 = dma.vmem_to_hbm [thread:$0]  %s212, 512, %s3, [#allocation4]
    $region25: #{neural_classifier_sample_forward.1} parent=1 // pred_fallthru
      _
    // Predicated region
    $region26: #{neural_classifier_sample_forward.1} parent=1 // pred_check
      _
    $region27: #{neural_classifier_sample_forward.1} parent=1 // pred_check_branch
      %216 = sbr.rel (0) target = $region29
    $region28: #{neural_classifier_sample_forward.1} parent=1 // pred_region
      %217 = dma.done [#allocation4], 512
    $region29: #{neural_classifier_sample_forward.1} parent=1 // pred_fallthru
      _
    %218 = vsyncpa [#allocation3], 1
    %219 = vsyncpa [#allocation6], 1
    %220 = vsyncpa [#allocation4], 1

</llo_original>
